<compile_context>
chip_gen: v7x
topology: tpu7x:2x2x1
jax: 0.10.0
libtpu: 0.0.40
codegen_flags: <defaults>
</compile_context>

<pallas_src>
import jax
import jax.numpy as jnp
from jax.experimental import pallas as pl
from jax.experimental.pallas import tpu as pltpu


def _preproc_kernel(a_ref, b_ref, x_ref, o_ref):
    # a_ref, b_ref: SMEM (C,) per-output-channel affine params (scalar prefetch)
    # x_ref: VMEM (1, C, t) tile of the NCHW-flattened input, source dtype
    # o_ref: VMEM (1, C, t) float32 output tile
    C = o_ref.shape[1]
    # Whole-tile convert first (handles uint8 / bf16 / f32 inputs uniformly),
    # then per-channel affine with the BGR->RGB flip as a static re-index.
    x = x_ref[...].astype(jnp.float32)          # (1, C, t)
    for c in range(C):                          # C == 3, static unroll
        o_ref[:, c, :] = x[:, C - 1 - c, :] * a_ref[c] + b_ref[c]


def _pick_hw_tile(hw: int) -> int:
    # ~1.5 MiB of f32 per (C=3, t) block; multiple of 128 lanes when tiling.
    max_t = 128 * 1024
    if hw <= max_t:
        return hw           # single lane-dense tile along the flattened axis
    return max_t            # remainder block (if any) is masked by Pallas


def detr_preprocess(x_nhwc, mean, std, scale):
    B, H, W, C = x_nhwc.shape
    HW = H * W

    # Glue: NHWC -> NCHW (torch permute(0,3,1,2)) in the *source* dtype, then a
    # free contiguous flatten of the spatial dims for lane-dense kernel blocks.
    x_nchw = jnp.transpose(x_nhwc, (0, 3, 1, 2)).reshape(B, C, HW)

    # Fold  (x / scale - mean) / std  into  x * a + b  per output channel.
    a = (1.0 / (scale * std)).astype(jnp.float32)   # (C,)
    b = (-mean / std).astype(jnp.float32)           # (C,)

    t = _pick_hw_tile(HW)
    num_t = pl.cdiv(HW, t)

    out = pl.pallas_call(
        _preproc_kernel,
        out_shape=jax.ShapeDtypeStruct((B, C, HW), jnp.float32),
        grid_spec=pltpu.PrefetchScalarGridSpec(
            num_scalar_prefetch=2,
            grid=(B, num_t),
            in_specs=[
                pl.BlockSpec((1, C, t),
                             lambda bi, ti, a_r, b_r: (bi, 0, ti)),
            ],
            out_specs=pl.BlockSpec((1, C, t),
                                   lambda bi, ti, a_r, b_r: (bi, 0, ti)),
        ),
        compiler_params=pltpu.CompilerParams(
            # Every (image, spatial-tile) output block is independent.
            dimension_semantics=("parallel", "parallel"),
            # ~6 MiB actually used; explicit limit keeps headroom and stays
            # within v7x's 64 MiB physical / 32 MiB default scoped VMEM.
            vmem_limit_bytes=32 * 1024 * 1024,
        ),
    )(a, b, x_nchw)

    return out.reshape(B, C, H, W)


if __name__ == "__main__":
    key = jax.random.PRNGKey(0)
    B, H, W, C = 2, 16, 16, 3

    # float32 image batch, pixel values in [0, 255)
    x = jax.random.uniform(key, (B, H, W, C), dtype=jnp.float32) * 255.0

    # buffers from the module's __init__ (deterministic, no checkpoint load)
    mean = jnp.array([0.485, 0.456, 0.406], dtype=jnp.float32)
    std = jnp.array([0.229, 0.224, 0.225], dtype=jnp.float32)
    scale = jnp.array([255.0], dtype=jnp.float32)

    out = jax.block_until_ready(detr_preprocess(x, mean, std, scale))

    # pure-JAX reference of the torch forward
    ref = jnp.transpose(x[..., ::-1], (0, 3, 1, 2)) / scale[0]
    ref = (ref - mean.reshape(1, C, 1, 1)) / std.reshape(1, C, 1, 1)
    assert out.shape == (B, C, H, W) and out.dtype == jnp.float32
    assert jnp.allclose(out, ref, atol=1e-5, rtol=1e-5), float(
        jnp.max(jnp.abs(out - ref)))

    # uint8 input path (the usual DETR case): transpose stays in uint8 (1/4 of
    # the HBM traffic), the f32 convert happens inside the kernel.
    x_u8 = (jax.random.uniform(jax.random.PRNGKey(1), (B, H, W, C)) *
            255.0).astype(jnp.uint8)
    out_u8 = jax.block_until_ready(detr_preprocess(x_u8, mean, std, scale))
    ref_u8 = jnp.transpose(x_u8[..., ::-1].astype(jnp.float32),
                           (0, 3, 1, 2)) / scale[0]
    ref_u8 = (ref_u8 - mean.reshape(1, C, 1, 1)) / std.reshape(1, C, 1, 1)
    assert jnp.allclose(out_u8, ref_u8, atol=1e-5, rtol=1e-5), float(
        jnp.max(jnp.abs(out_u8 - ref_u8)))

    print("KERNEL_OK")
</pallas_src>

<mosaic_0001>
module attributes {stable_mosaic.version = 11 : i64} {
  func.func @_preproc_kernel(%arg0: i32, %arg1: i32, %arg2: memref<3xf32, #tpu.memory_space<smem>>, %arg3: memref<3xf32, #tpu.memory_space<smem>>, %arg4: memref<1x3x256xf32, #tpu.memory_space<vmem>>, %arg5: memref<1x3x256xf32, #tpu.memory_space<vmem>>) attributes {dimension_semantics = [#tpu.dimension_semantics<parallel>, #tpu.dimension_semantics<parallel>], iteration_bounds = array<i64: 2, 1>, scalar_prefetch = 2 : i64, scratch_operands = 0 : i64, tpu.core_type = #tpu.core_type<tc>, window_params = [{transform_indices = @transform_0, window_bounds = array<i64: 1, 3, 256>}, {transform_indices = @transform_1, window_bounds = array<i64: 1, 3, 256>}]} {
    %c0 = arith.constant 0 : index
    %c0_0 = arith.constant 0 : index
    %c0_1 = arith.constant 0 : index
    %0 = vector.load %arg4[%c0, %c0_0, %c0_1] : memref<1x3x256xf32, #tpu.memory_space<vmem>>, vector<1x3x256xf32>
    %1 = vector.extract_strided_slice %0 {offsets = [0, 2, 0], sizes = [1, 1, 256], strides = [1, 1, 1]} : vector<1x3x256xf32> to vector<1x1x256xf32>
    %2 = vector.shape_cast %1 : vector<1x1x256xf32> to vector<1x256xf32>
    %c0_2 = arith.constant 0 : index
    %3 = memref.load %arg2[%c0_2] : memref<3xf32, #tpu.memory_space<smem>>
    %4 = vector.broadcast %3 : f32 to vector<1x256xf32>
    %5 = arith.mulf %2, %4 : vector<1x256xf32>
    %c0_3 = arith.constant 0 : index
    %6 = memref.load %arg3[%c0_3] : memref<3xf32, #tpu.memory_space<smem>>
    %7 = vector.broadcast %6 : f32 to vector<1x256xf32>
    %8 = arith.addf %5, %7 : vector<1x256xf32>
    %c0_4 = arith.constant 0 : index
    %c0_5 = arith.constant 0 : index
    %c0_6 = arith.constant 0 : index
    %9 = vector.load %arg5[%c0_4, %c0_5, %c0_6] : memref<1x3x256xf32, #tpu.memory_space<vmem>>, vector<1x1x256xf32>
    %10 = vector.shape_cast %9 : vector<1x1x256xf32> to vector<1x256xf32>
    %11 = vector.shape_cast %8 : vector<1x256xf32> to vector<1x1x256xf32>
    tpu.vector_store %arg5[%c0_4, %c0_5, %c0_6], %11 {strides = array<i32>} : memref<1x3x256xf32, #tpu.memory_space<vmem>>, vector<1x1x256xf32>,
    %12 = vector.extract_strided_slice %0 {offsets = [0, 1, 0], sizes = [1, 1, 256], strides = [1, 1, 1]} : vector<1x3x256xf32> to vector<1x1x256xf32>
    %13 = vector.shape_cast %12 : vector<1x1x256xf32> to vector<1x256xf32>
    %c1 = arith.constant 1 : index
    %14 = memref.load %arg2[%c1] : memref<3xf32, #tpu.memory_space<smem>>
    %15 = vector.broadcast %14 : f32 to vector<1x256xf32>
    %16 = arith.mulf %13, %15 : vector<1x256xf32>
    %c1_7 = arith.constant 1 : index
    %17 = memref.load %arg3[%c1_7] : memref<3xf32, #tpu.memory_space<smem>>
    %18 = vector.broadcast %17 : f32 to vector<1x256xf32>
    %19 = arith.addf %16, %18 : vector<1x256xf32>
    %c0_8 = arith.constant 0 : index
    %c1_9 = arith.constant 1 : index
    %c0_10 = arith.constant 0 : index
    %20 = vector.load %arg5[%c0_8, %c1_9, %c0_10] : memref<1x3x256xf32, #tpu.memory_space<vmem>>, vector<1x1x256xf32>
    %21 = vector.shape_cast %20 : vector<1x1x256xf32> to vector<1x256xf32>
    %22 = vector.shape_cast %19 : vector<1x256xf32> to vector<1x1x256xf32>
    tpu.vector_store %arg5[%c0_8, %c1_9, %c0_10], %22 {strides = array<i32>} : memref<1x3x256xf32, #tpu.memory_space<vmem>>, vector<1x1x256xf32>,
    %23 = vector.extract_strided_slice %0 {offsets = [0, 0, 0], sizes = [1, 1, 256], strides = [1, 1, 1]} : vector<1x3x256xf32> to vector<1x1x256xf32>
    %24 = vector.shape_cast %23 : vector<1x1x256xf32> to vector<1x256xf32>
    %c2 = arith.constant 2 : index
    %25 = memref.load %arg2[%c2] : memref<3xf32, #tpu.memory_space<smem>>
    %26 = vector.broadcast %25 : f32 to vector<1x256xf32>
    %27 = arith.mulf %24, %26 : vector<1x256xf32>
    %c2_11 = arith.constant 2 : index
    %28 = memref.load %arg3[%c2_11] : memref<3xf32, #tpu.memory_space<smem>>
    %29 = vector.broadcast %28 : f32 to vector<1x256xf32>
    %30 = arith.addf %27, %29 : vector<1x256xf32>
    %c0_12 = arith.constant 0 : index
    %c2_13 = arith.constant 2 : index
    %c0_14 = arith.constant 0 : index
    %31 = vector.load %arg5[%c0_12, %c2_13, %c0_14] : memref<1x3x256xf32, #tpu.memory_space<vmem>>, vector<1x1x256xf32>
    %32 = vector.shape_cast %31 : vector<1x1x256xf32> to vector<1x256xf32>
    %33 = vector.shape_cast %30 : vector<1x256xf32> to vector<1x1x256xf32>
    tpu.vector_store %arg5[%c0_12, %c2_13, %c0_14], %33 {strides = array<i32>} : memref<1x3x256xf32, #tpu.memory_space<vmem>>, vector<1x1x256xf32>,
    return
  }
  func.func @transform_0(%arg0: i32, %arg1: i32, %arg2: memref<3xf32, #tpu.memory_space<smem>>, %arg3: memref<3xf32, #tpu.memory_space<smem>>) -> (i32, i32, i32) {
    %c0_i32 = arith.constant 0 : i32
    %c0_i32_0 = arith.constant 0 : i32
    return %arg0, %c0_i32, %arg1 : i32, i32, i32
  }
  func.func @transform_1(%arg0: i32, %arg1: i32, %arg2: memref<3xf32, #tpu.memory_space<smem>>, %arg3: memref<3xf32, #tpu.memory_space<smem>>) -> (i32, i32, i32) {
    %c0_i32 = arith.constant 0 : i32
    %c0_i32_0 = arith.constant 0 : i32
    return %arg0, %c0_i32, %arg1 : i32, i32, i32
  }
}

</mosaic_0001>

<llo_original>
// kernel: tpu_custom_call.1
$region0: #{tpu_custom_call.1}
  #allocation0 [shape = 'u32[]', space=smem, size = 0x4, offset = 0x4, fixed_abs, tag = 'smem constant byte address 0x4 - core index']
  #allocation1 [shape = 'u32[144,128]{1,0:T(1,128)}', space=vmem, size = 0x12000, scoped, tag = 'internal scratch']
  #allocation2 [shape = 's32[1]{0}', space=sflag, size = 0x4, scoped, tag = 'scoped memory for tpu_custom_call.1']
  #allocation3 [shape = 'u8[512]{0}', space=smem, size = 0x200, scoped, tag = 'prefetched SMEM operand 0']
  #allocation4 [shape = 'u8[512]{0}', space=smem, size = 0x200, scoped, tag = 'prefetched SMEM operand 1']
  %s0 = inlined_call_operand.vmem [shape: f32[3], index: 0, kind: input, shape index: {}]
  %s1 = inlined_call_operand.vmem [shape: f32[3], index: 1, kind: input, shape index: {}]
  %s2 = inlined_call_operand.vmem [shape: f32[2,3,256], index: 2, kind: input, shape index: {}]
  %s3 = inlined_call_operand.vmem [shape: f32[2,3,256], index: 3, kind: output, shape index: {}]
  %s4 = sld [smem:[#allocation0]]
  $region37: #{tpu_custom_call.1} parent=0
    _
  %s6 = ssub.s32 1, %s4
  %s7 = scalar_select 0, %s6, %s4
  %s8 = sshll.u32 %s0, 4
  %s9 = int_to_ptr.vmem [resolvable:$true] %s8
  %11 = dma.vmem_to_smem %s9, 16, [#allocation3], [#allocation2]
  %s12 = sshll.u32 %s1, 4
  %s13 = int_to_ptr.vmem [resolvable:$true] %s12
  %15 = dma.vmem_to_smem %s13, 16, [#allocation4], [#allocation2]
  %16 = dma.done [#allocation2], 32
  %17 = sfence
  loop: start=0, step=1, limit=4
  $region2: #{tpu_custom_call.1} parent=0 // loop_pre_header
    _
  $region3: #{tpu_custom_call.1} parent=0 // loop_header
    %s19 = sphi 0, %s23
    %p20 = scmp.ge.s32.totalorder %s19, 4
    %s26 = sphi 0, %s38
    %s27 = sphi 0, %s34
    %s28 = sphi 0, %s26
    %s29 = sphi 0, %s27
    %s30 = sphi 0, %s28
    %s31 = sphi 0, %s29
    %s43 = sphi 0, %s45
    %s46 = sphi 0, %s43
    %s47 = sphi 0, %s46
    %s63 = sphi 0, %s47
    %s71 = sphi 0, %s73
    %s74 = sphi 0, %s71
    %s75 = sphi 0, %s74
    %s91 = sphi 0, %s75
  $region4: #{tpu_custom_call.1} parent=0 // loop_header_branch
    %22 = sbr.rel (%p20) target = $region8
  $region5: #{tpu_custom_call.1} parent=0 // loop_body
    %s24 = ssub.s32 %s19, 1
    %s25 = ssub.s32 %s19, 2
    %s32 = sadd.s32 1, %s27
    %p33 = scmp.ge.s32.totalorder %s32, 1
    %s34 = scalar_select %p33, 0, %s32
    %s35 = sadd.s32 1, %s26
    %s36 = scalar_select %p33, %s35, %s26
    %p37 = scmp.ge.s32.totalorder %s36, 2
    %s38 = scalar_select %p37, 0, %s36
    %s39 = ssub.s32 %s26, %s38
    %s40 = ssub.s32 %s27, %s34
    %s41 = sor.u32 %s39, %s40
    %p42 = scmp.eq.s32.totalorder %s41, 0
    %s44 = sadd.s32 %s43, 1
    %s45 = scalar_select %p42, %s43, %s44
    %p48 = pneg %p42
    %p49 = scmp.eq.s32.totalorder %s19, 1
    %p50 = por %p48, %p49
    %p51 = scmp.ne.s32.totalorder %s43, %s46
    %p52 = scmp.eq.s32.totalorder %s19, 0
    %p53 = por %p51, %p52
    %p54 = scmp.ne.s32.totalorder %s43, %s46
    %p55 = scmp.eq.s32.totalorder %s24, 1
    %p56 = por %p54, %p55
    %p57 = scmp.ne.s32.totalorder %s46, %s47
    %p58 = scmp.eq.s32.totalorder %s24, 0
    %p59 = por %p57, %p58
    %p60 = scmp.ne.s32.totalorder %s46, %s47
    %p61 = scmp.eq.s32.totalorder %s25, 1
    %p62 = por %p60, %p61
    %p64 = scmp.ne.s32.totalorder %s47, %s63
    %p65 = scmp.eq.s32.totalorder %s25, 0
    %p66 = por %p64, %p65
    %s67 = ssub.s32 %s26, %s38
    %s68 = ssub.s32 %s27, %s34
    %s69 = sor.u32 %s67, %s68
    %p70 = scmp.eq.s32.totalorder %s69, 0
    %s72 = sadd.s32 %s71, 1
    %s73 = scalar_select %p70, %s71, %s72
    %p76 = pneg %p70
    %p77 = scmp.eq.s32.totalorder %s19, 1
    %p78 = por %p76, %p77
    %p79 = scmp.ne.s32.totalorder %s71, %s74
    %p80 = scmp.eq.s32.totalorder %s19, 0
    %p81 = por %p79, %p80
    %p82 = scmp.ne.s32.totalorder %s71, %s74
    %p83 = scmp.eq.s32.totalorder %s24, 1
    %p84 = por %p82, %p83
    %p85 = scmp.ne.s32.totalorder %s74, %s75
    %p86 = scmp.eq.s32.totalorder %s24, 0
    %p87 = por %p85, %p86
    %p88 = scmp.ne.s32.totalorder %s74, %s75
    %p89 = scmp.eq.s32.totalorder %s25, 1
    %p90 = por %p88, %p89
    %p92 = scmp.ne.s32.totalorder %s75, %s91
    %p93 = scmp.eq.s32.totalorder %s25, 0
    %p94 = por %p92, %p93
    %p95 = scmp.le.s32.totalorder 1, %s19
    %p96 = scmp.lt.s32.totalorder %s19, 3
    %p97 = pnand %p95, %p96
    %p98 = pneg %p97
    // Predicated region
    $region9: #{tpu_custom_call.1} parent=5 // pred_check
      _
    $region10: #{tpu_custom_call.1} parent=5 // pred_check_branch
      %100 = sbr.rel (%p97) target = $region12
    $region11: #{tpu_custom_call.1} parent=5 // pred_region
      %s101 = ssub.s32 %s19, 1
    $region12: #{tpu_custom_call.1} parent=5 // pred_fallthru
      _
    %p102 = scmp.lt.s32.totalorder %s19, 2
    // Predicated region
    $region13: #{tpu_custom_call.1} parent=5 // pred_check
      %p103 = pneg %p102
    $region14: #{tpu_custom_call.1} parent=5 // pred_check_branch
      %105 = sbr.rel (%p103) target = $region16
    $region15: #{tpu_custom_call.1} parent=5 // pred_region
      // Predicated region
      $region17: #{tpu_custom_call.1} parent=15 // pred_check
        %p106 = pneg %p53
      $region18: #{tpu_custom_call.1} parent=15 // pred_check_branch
        %108 = sbr.rel (%p106) target = $region20
      $region19: #{tpu_custom_call.1} parent=15 // pred_region
        %s109 = smul.u32 2, %s27
        %p110 = scmp.lt.s32.totalorder %s26, 1
        %s111 = scalar_select %p110, %s26, 1
        %p112 = scmp.lt.s32.totalorder %s109, 1
        %s113 = scalar_select %p112, %s109, 1
        %s114 = smul.addr %s111, 2
        %s115 = sadd.s32 %s113, %s114
        %s116 = smul.addr %s115, 4
        %s117 = scalar_lea.vmem %s2, %s116
        %s118 = smul.u32 2, %s27
      $region20: #{tpu_custom_call.1} parent=15 // pred_fallthru
        _
    $region16: #{tpu_custom_call.1} parent=5 // pred_fallthru
      _
    %p119 = scmp.le.s32.totalorder 1, %s19
    %p120 = scmp.lt.s32.totalorder %s19, 3
    %p121 = pnand %p119, %p120
    %p122 = pneg %p121
    // Predicated region
    $region21: #{tpu_custom_call.1} parent=5 // pred_check
      _
    $region22: #{tpu_custom_call.1} parent=5 // pred_check_branch
      %124 = sbr.rel (%p121) target = $region24
    $region23: #{tpu_custom_call.1} parent=5 // pred_region
      %s125 = ssub.s32 %s19, 1
      %s126 = smul.u32 2, %s29
      %p127 = scmp.lt.s32.totalorder %s28, 1
      %s128 = scalar_select %p127, %s28, 1
      %p129 = scmp.lt.s32.totalorder %s126, 1
      %s130 = scalar_select %p129, %s126, 1
      %s131 = smul.addr %s128, 2
      %s132 = sadd.s32 %s130, %s131
      %s133 = smul.addr %s132, 4
      %s134 = scalar_lea.vmem %s2, %s133
      %p135 = pneg %p59
      %p136 = pneg %p56
      %p137 = pneg %p87
      %p138 = pneg %p84
      %s139 = smul.u32 2, %s29
      %p140 = scmp.lt.s32.totalorder %s28, 1
      %s141 = scalar_select %p140, %s28, 1
      %p142 = scmp.lt.s32.totalorder %s139, 1
      %s143 = scalar_select %p142, %s139, 1
      %s144 = smul.addr %s141, 2
      %s145 = sadd.s32 %s143, %s144
      %s146 = smul.addr %s145, 4
      %s147 = scalar_lea.vmem %s3, %s146
      %s148 = smul.u32 2, %s29
      %p149 = scmp.lt.s32.totalorder %s28, 1
      %s150 = scalar_select %p149, %s28, 1
      %p151 = scmp.lt.s32.totalorder %s148, 1
      %s152 = scalar_select %p151, %s148, 1
      %s153 = smul.addr %s150, 2
      %s154 = sadd.s32 %s152, %s153
      %s155 = smul.addr %s154, 4
      %s156 = scalar_lea.vmem %s2, %s155
      %s157 = smul.u32 2, %s29
      %s158 = smul.u32 2, %s29
      %p159 = scmp.lt.s32.totalorder %s28, 1
      %s160 = scalar_select %p159, %s28, 1
      %p161 = scmp.lt.s32.totalorder %s158, 1
      %s162 = scalar_select %p161, %s158, 1
      %s163 = smul.addr %s160, 2
      %s164 = sadd.s32 %s162, %s163
      %s165 = smul.addr %s164, 4
      %s166 = scalar_lea.vmem %s3, %s165
      %s167 = smul.u32 2, %s29
      %v168 = vld [vmem:[%s156] sm:$0x77]
      %s169 = sld [smem:[#allocation3]]
      %v170 = vstv %s169
      %v171 = vmul.f32 %v168, %v170
      %s172 = sld [smem:[#allocation4]]
      %v173 = vstv %s172
      %v174 = vadd.f32 %v171, %v173
      %v177 = vunpack.c.l.s4 1966171168
      %v178 = vunpack.c.0.s8 %v177
      %v179 = vlaneseq
      %v180 = vshrl.u32 %v179, 7
      %v181 = vsub.s32 %v178, %v180
      %v182 = vrot.slane %v174, %v181
      %v184 = vunpack.c.l.s4 1966171168
      %v185 = vunpack.c.0.s8 %v184
      %v186 = vlaneseq
      %v187 = vshrl.u32 %v186, 7
      %v188 = vsub.s32 %v185, %v187
      %v189 = vrot.slane %v182, %v188
      %v190 = vcombine.high %v189, %v189
      %v192 = vlaneseq
      %vm193 = vcmp.ge.s32.totalorder %v192, 0
      %vm194 = vcmp.lt.s32.totalorder %v192, 256
      %vm195 = vmand %vm193, %vm194
      %196 = vst.msk [vmem:[%s166] ss:$4 sm:$0x3] %vm195, %v190
      %s197 = sld [smem:[#allocation3 + $0x1]]
      %v198 = vstv %s197
      %v199 = vmul.f32 %v168, %v198
      %s200 = sld [smem:[#allocation4 + $0x1]]
      %v201 = vstv %s200
      %v202 = vadd.f32 %v199, %v201
      %v205 = vunpack.c.l.s4 1966171168
      %v206 = vunpack.c.0.s8 %v205
      %v207 = vlaneseq
      %v208 = vshrl.u32 %v207, 7
      %v209 = vsub.s32 %v206, %v208
      %v210 = vrot.slane %v202, %v209
      %v211 = vcombine.high %v210, %v210
      %v213 = vunpack.c.l.s4 1966171168
      %v214 = vunpack.c.0.s8 %v213
      %v215 = vlaneseq
      %v216 = vshrl.u32 %v215, 7
      %v217 = vsub.s32 %v214, %v216
      %v218 = vrot.slane %v211, %v217
      %s220 = scalar_lea.vmem %s166, 1
      %221 = vst.msk [vmem:[%s220] ss:$4 sm:$0x3] %vm195, %v218
      %s222 = sld [smem:[#allocation3 + $0x2]]
      %v223 = vstv %s222
      %v224 = vmul.f32 %v168, %v223
      %s225 = sld [smem:[#allocation4 + $0x2]]
      %v226 = vstv %s225
      %v227 = vadd.f32 %v224, %v226
      %v230 = vunpack.c.l.s4 1966171168
      %v231 = vunpack.c.0.s8 %v230
      %v232 = vlaneseq
      %v233 = vshrl.u32 %v232, 7
      %v234 = vsub.s32 %v231, %v233
      %v235 = vrot.slane %v227, %v234
      %v237 = vunpack.c.l.s4 1966171168
      %v238 = vunpack.c.0.s8 %v237
      %v239 = vlaneseq
      %v240 = vshrl.u32 %v239, 7
      %v241 = vsub.s32 %v238, %v240
      %v242 = vrot.slane %v235, %v241
      %s244 = scalar_lea.vmem %s166, 2
      %245 = vst.msk [vmem:[%s244] ss:$4 sm:$0x3] %vm195, %v242
      %s246 = smul.u32 2, %s29
      %p247 = scmp.lt.s32.totalorder %s28, 1
      %s248 = scalar_select %p247, %s28, 1
      %p249 = scmp.lt.s32.totalorder %s246, 1
      %s250 = scalar_select %p249, %s246, 1
      %s251 = smul.addr %s248, 2
      %s252 = sadd.s32 %s250, %s251
      %s253 = smul.addr %s252, 4
      %s254 = scalar_lea.vmem %s3, %s253
      // Predicated region
      $region25: #{tpu_custom_call.1} parent=23 // pred_check
        %p255 = pneg %p84
      $region26: #{tpu_custom_call.1} parent=23 // pred_check_branch
        %257 = sbr.rel (%p255) target = $region28
      $region27: #{tpu_custom_call.1} parent=23 // pred_region
        %s258 = smul.u32 2, %s29
      $region28: #{tpu_custom_call.1} parent=23 // pred_fallthru
        _
    $region24: #{tpu_custom_call.1} parent=5 // pred_fallthru
      _
    %p259 = scmp.le.s32.totalorder 2, %s19
    // Predicated region
    $region29: #{tpu_custom_call.1} parent=5 // pred_check
      %p260 = pneg %p259
    $region30: #{tpu_custom_call.1} parent=5 // pred_check_branch
      %262 = sbr.rel (%p260) target = $region32
    $region31: #{tpu_custom_call.1} parent=5 // pred_region
      %s263 = ssub.s32 %s19, 2
      // Predicated region
      $region33: #{tpu_custom_call.1} parent=31 // pred_check
        %p264 = pneg %p90
      $region34: #{tpu_custom_call.1} parent=31 // pred_check_branch
        %266 = sbr.rel (%p264) target = $region36
      $region35: #{tpu_custom_call.1} parent=31 // pred_region
        %s267 = smul.u32 2, %s31
        %p268 = scmp.lt.s32.totalorder %s30, 1
        %s269 = scalar_select %p268, %s30, 1
        %p270 = scmp.lt.s32.totalorder %s267, 1
        %s271 = scalar_select %p270, %s267, 1
        %s272 = smul.addr %s269, 2
        %s273 = sadd.s32 %s271, %s272
        %s274 = smul.addr %s273, 4
        %s275 = scalar_lea.vmem %s3, %s274
      $region36: #{tpu_custom_call.1} parent=31 // pred_fallthru
        _
    $region32: #{tpu_custom_call.1} parent=5 // pred_fallthru
      _
  $region6: #{tpu_custom_call.1} parent=0 // loop_footer
    %s23 = sadd.s32 1, %s19
  $region7: #{tpu_custom_call.1} parent=0 // loop_footer_branch
    %18 = sbr.rel target = $region3
  $region8: #{tpu_custom_call.1} parent=0 // loop_exit
    _

</llo_original>
